<compile_context>
chip_gen: v6e
topology: v6e:2x2x1
jax: 0.10.0
libtpu: 0.0.40
codegen_flags: <defaults>
</compile_context>

<pallas_src>
import functools

import jax
import jax.numpy as jnp
from jax.experimental import pallas as pl
from jax.experimental.pallas import tpu as pltpu


def _round_up(n, m):
    return ((n + m - 1) // m) * m


def _choose_batch_tile(batch, max_tile=2048):
    """Adaptive sublane tile: multiple of 8, <= max_tile rows, >=2 tiles for large batches."""
    if batch <= 8:
        # Single block equal to the full (small) batch dim — legal since the block dim
        # equals the full array dim; avoids padded garbage rows entirely.
        return batch
    n_tiles = max(2, -(-batch // max_tile))          # >=2 grid steps -> v7x megacore
    return _round_up(-(-batch // n_tiles), 8)


def _actor_kernel(n_layers, *refs):
    """refs = (x_ref, w0, b0, w1, b1, ..., w_{L-1}, b_{L-1}, out_ref).

    Hidden layers: Linear + ReLU. Final layer: Linear + numerically-stable softmax over the
    last axis. The final weight/bias are unpadded in their output dim, so no logit masking
    is required (hidden padded columns are exact zeros by construction of the padded params).
    """
    x_ref = refs[0]
    out_ref = refs[-1]
    params = refs[1:-1]

    h = x_ref[...]
    for layer in range(n_layers):
        w_ref = params[2 * layer]
        b_ref = params[2 * layer + 1]
        # MXU matmul: bf16 operands, f32 accumulation. Bias add in f32 (VPU).
        z = jnp.dot(h.astype(w_ref.dtype), w_ref[...],
                    preferred_element_type=jnp.float32) + b_ref[...]
        if layer < n_layers - 1:
            # ReLU in f32 (v5e-safe), then store the activation in bf16 for the next matmul.
            h = jnp.maximum(z, 0.0).astype(w_ref.dtype)
        else:
            m = jnp.max(z, axis=-1, keepdims=True)        # XLU reduce
            e = jnp.exp(z - m)                            # EUP
            denom = jnp.sum(e, axis=-1, keepdims=True)    # XLU reduce
            inv = pl.reciprocal(denom, approx=True)       # EUP vrcp (free slot)
            inv = inv * (2.0 - denom * inv)               # Newton step -> ~f32 accurate
            h = e * inv
    out_ref[...] = h.astype(out_ref.dtype)


def prepare_params(weights, biases, compute_dtype=jnp.bfloat16):
    """Pad/cast parameters ONCE (hoisted out of the per-call path).

    weights[i]: [in_i, out_i] (already transposed vs. PyTorch), biases[i]: [out_i] or [1, out_i].
    Hidden in/out dims are zero-padded to multiples of 128 (lane-dense MXU tiles); the first
    layer's input dim and the last layer's output dim are left unpadded so x and the output
    need no padding/slicing at call time.
    Returns a flat tuple (w0, b0, w1, b1, ...).
    """
    n = len(weights)
    padded = []
    for i, (w, b) in enumerate(zip(weights, biases)):
        in_d, out_d = w.shape
        p_in = in_d if i == 0 else _round_up(in_d, 128)
        p_out = out_d if i == n - 1 else _round_up(out_d, 128)
        w_p = jnp.zeros((p_in, p_out), compute_dtype)
        w_p = w_p.at[:in_d, :out_d].set(w.astype(compute_dtype))
        b2 = jnp.reshape(b, (1, -1)).astype(jnp.float32)
        b_p = jnp.zeros((1, p_out), jnp.float32)
        b_p = b_p.at[:, :out_d].set(b2)
        padded += [w_p, b_p]
    return tuple(padded)


def actor_forward(x, padded_params, *, max_batch_tile=2048):
    """x: [batch, state_dim] f32 (unpadded). padded_params: output of prepare_params.

    Returns softmax probabilities of shape [batch, action_dim] (f32).
    """
    n_layers = len(padded_params) // 2
    batch, state_dim = x.shape
    action_dim = padded_params[2 * (n_layers - 1)].shape[1]

    tb = _choose_batch_tile(batch, max_batch_tile)
    grid = (pl.cdiv(batch, tb),)

    # x is streamed/tiled over the batch; params use constant index_maps so they are DMA'd
    # once and stay VMEM-resident across all grid steps.
    in_specs = [pl.BlockSpec((tb, state_dim), lambda i: (i, 0))]
    for p in padded_params:
        in_specs.append(pl.BlockSpec(p.shape, lambda i: (0, 0)))
    out_specs = pl.BlockSpec((tb, action_dim), lambda i: (i, 0))

    # Explicit scoped-VMEM budget: 2x buffered x/out tiles + 2x params + f32 intermediates,
    # with 2x headroom, clamped to [32 MiB, 64 MiB] (safe on v5e/v6e/v7x).
    param_bytes = sum(int(p.size) * p.dtype.itemsize for p in padded_params)
    max_width = max(p.shape[1] for p in padded_params[::2])
    est = (2 * tb * state_dim * x.dtype.itemsize
           + 2 * tb * action_dim * 4
           + 2 * param_bytes
           + 4 * tb * max_width * 4)
    vmem_limit = int(min(max(2 * est, 32 << 20), 64 << 20))

    kernel = functools.partial(_actor_kernel, n_layers)
    return pl.pallas_call(
        kernel,
        out_shape=jax.ShapeDtypeStruct((batch, action_dim), jnp.float32),
        grid=grid,
        in_specs=in_specs,
        out_specs=out_specs,
        # Batch axis is embarrassingly parallel -> megacore sharding on v7x.
        compiler_params=pltpu.CompilerParams(
            dimension_semantics=("parallel",),
            vmem_limit_bytes=vmem_limit),
    )(x, *padded_params)


def init_params(key, state_dim, action_dim, hidden_layers):
    """Deterministic init mimicking nn.Linear defaults: U(-1/sqrt(fan_in), 1/sqrt(fan_in))."""
    dims = [state_dim] + list(hidden_layers) + [action_dim]
    weights, biases = [], []
    for i in range(len(dims) - 1):
        fan_in, fan_out = dims[i], dims[i + 1]
        key, kw, kb = jax.random.split(key, 3)
        bound = 1.0 / jnp.sqrt(jnp.float32(fan_in))
        # Stored as [in, out] (already transposed relative to PyTorch's [out, in]).
        w = jax.random.uniform(kw, (fan_in, fan_out), jnp.float32, -bound, bound)
        b = jax.random.uniform(kb, (1, fan_out), jnp.float32, -bound, bound)
        weights.append(w)
        biases.append(b)
    return weights, biases


def reference_forward(x, weights, biases, compute_dtype=jnp.float32):
    """Pure-JAX reference. compute_dtype controls matmul operand precision only
    (f32 accumulation); elementwise math is f32, matching the kernel."""
    h = x
    for i, (w, b) in enumerate(zip(weights, biases)):
        z = jnp.dot(h.astype(compute_dtype), w.astype(compute_dtype),
                    preferred_element_type=jnp.float32) + jnp.reshape(b, (1, -1))
        if i < len(weights) - 1:
            h = jnp.maximum(z, 0.0)
        else:
            h = jax.nn.softmax(z, axis=-1)
    return h


if __name__ == "__main__":
    key = jax.random.PRNGKey(0)
    batch, state_dim, action_dim = 4, 16, 8
    hidden_layers = [32, 32]

    key, kx = jax.random.split(key)
    x = jax.random.normal(kx, (batch, state_dim), jnp.float32)
    weights, biases = init_params(key, state_dim, action_dim, hidden_layers)

    # Parameter padding/casting hoisted out of the per-call path (amortized across calls).
    padded_params = prepare_params(weights, biases)

    forward = jax.jit(lambda xx: actor_forward(xx, padded_params))
    out = jax.block_until_ready(forward(x))
    assert out.shape == (batch, action_dim)

    # Softmax rows must sum to 1.
    assert bool(jnp.allclose(jnp.sum(out, axis=-1), 1.0, atol=1e-3))

    # Matched-numerics reference (same bf16 operands / f32 accumulation as the kernel).
    ref_bf16 = reference_forward(x, weights, biases, compute_dtype=jnp.bfloat16)
    assert bool(jnp.allclose(out, ref_bf16, atol=2e-3, rtol=2e-3))

    # Semantic reference (pure f32, matches the PyTorch module); tolerance covers
    # the intentional bf16 matmul-operand noise.
    ref_f32 = reference_forward(x, weights, biases, compute_dtype=jnp.float32)
    assert bool(jnp.allclose(out, ref_f32, atol=5e-2, rtol=5e-2))

    print("KERNEL_OK")
</pallas_src>

<mosaic_0001>
module attributes {stable_mosaic.version = 11 : i64} {
  func.func @_actor_kernel(%arg0: i32, %arg1: memref<4x16xf32, #tpu.memory_space<vmem>>, %arg2: memref<16x128xbf16, #tpu.memory_space<vmem>>, %arg3: memref<1x128xf32, #tpu.memory_space<vmem>>, %arg4: memref<128x128xbf16, #tpu.memory_space<vmem>>, %arg5: memref<1x128xf32, #tpu.memory_space<vmem>>, %arg6: memref<128x8xbf16, #tpu.memory_space<vmem>>, %arg7: memref<1x8xf32, #tpu.memory_space<vmem>>, %arg8: memref<4x8xf32, #tpu.memory_space<vmem>>) attributes {dimension_semantics = [#tpu.dimension_semantics<parallel>], iteration_bounds = array<i64: 1>, scalar_prefetch = 0 : i64, scratch_operands = 0 : i64, tpu.core_type = #tpu.core_type<tc>, window_params = [{transform_indices = @transform_0, window_bounds = array<i64: 4, 16>}, {pipeline_mode = #tpu.pipeline_mode<synchronous>, transform_indices = @transform_1, window_bounds = array<i64: 16, 128>}, {pipeline_mode = #tpu.pipeline_mode<synchronous>, transform_indices = @transform_2, window_bounds = array<i64: 1, 128>}, {pipeline_mode = #tpu.pipeline_mode<synchronous>, transform_indices = @transform_3, window_bounds = array<i64: 128, 128>}, {pipeline_mode = #tpu.pipeline_mode<synchronous>, transform_indices = @transform_4, window_bounds = array<i64: 1, 128>}, {pipeline_mode = #tpu.pipeline_mode<synchronous>, transform_indices = @transform_5, window_bounds = array<i64: 128, 8>}, {pipeline_mode = #tpu.pipeline_mode<synchronous>, transform_indices = @transform_6, window_bounds = array<i64: 1, 8>}, {transform_indices = @transform_7, window_bounds = array<i64: 4, 8>}]} {
    %c0 = arith.constant 0 : index
    %c0_0 = arith.constant 0 : index
    %0 = vector.load %arg1[%c0, %c0_0] : memref<4x16xf32, #tpu.memory_space<vmem>>, vector<4x16xf32>
    %1 = arith.truncf %0 : vector<4x16xf32> to vector<4x16xbf16>
    %c0_1 = arith.constant 0 : index
    %c0_2 = arith.constant 0 : index
    %2 = vector.load %arg2[%c0_1, %c0_2] : memref<16x128xbf16, #tpu.memory_space<vmem>>, vector<16x128xbf16>
    %cst = arith.constant dense<0.000000e+00> : vector<4x128xf32>
    %3 = tpu.matmul %1, %2, %cst {dimension_numbers = #tpu.dot_dimension_numbers<[1], [0], [0], [1], [0, 0, 1, 1], [], []>} : vector<4x16xbf16>, vector<16x128xbf16>, vector<4x128xf32> -> vector<4x128xf32>
    %c0_3 = arith.constant 0 : index
    %c0_4 = arith.constant 0 : index
    %4 = vector.load %arg3[%c0_3, %c0_4] : memref<1x128xf32, #tpu.memory_space<vmem>>, vector<1x128xf32>
    %5 = vector.broadcast %4 : vector<1x128xf32> to vector<4x128xf32>
    %6 = arith.addf %3, %5 : vector<4x128xf32>
    %cst_5 = arith.constant 0.000000e+00 : f32
    %7 = vector.broadcast %cst_5 : f32 to vector<4x128xf32>
    %8 = arith.maximumf %6, %7 : vector<4x128xf32>
    %9 = arith.truncf %8 : vector<4x128xf32> to vector<4x128xbf16>
    %c0_6 = arith.constant 0 : index
    %c0_7 = arith.constant 0 : index
    %10 = vector.load %arg4[%c0_6, %c0_7] : memref<128x128xbf16, #tpu.memory_space<vmem>>, vector<128x128xbf16>
    %cst_8 = arith.constant dense<0.000000e+00> : vector<4x128xf32>
    %11 = tpu.matmul %9, %10, %cst_8 {dimension_numbers = #tpu.dot_dimension_numbers<[1], [0], [0], [1], [0, 0, 1, 1], [], []>} : vector<4x128xbf16>, vector<128x128xbf16>, vector<4x128xf32> -> vector<4x128xf32>
    %c0_9 = arith.constant 0 : index
    %c0_10 = arith.constant 0 : index
    %12 = vector.load %arg5[%c0_9, %c0_10] : memref<1x128xf32, #tpu.memory_space<vmem>>, vector<1x128xf32>
    %13 = vector.broadcast %12 : vector<1x128xf32> to vector<4x128xf32>
    %14 = arith.addf %11, %13 : vector<4x128xf32>
    %cst_11 = arith.constant 0.000000e+00 : f32
    %15 = vector.broadcast %cst_11 : f32 to vector<4x128xf32>
    %16 = arith.maximumf %14, %15 : vector<4x128xf32>
    %17 = arith.truncf %16 : vector<4x128xf32> to vector<4x128xbf16>
    %c0_12 = arith.constant 0 : index
    %c0_13 = arith.constant 0 : index
    %18 = vector.load %arg6[%c0_12, %c0_13] : memref<128x8xbf16, #tpu.memory_space<vmem>>, vector<128x8xbf16>
    %cst_14 = arith.constant dense<0.000000e+00> : vector<4x8xf32>
    %19 = tpu.matmul %17, %18, %cst_14 {dimension_numbers = #tpu.dot_dimension_numbers<[1], [0], [0], [1], [0, 0, 1, 1], [], []>} : vector<4x128xbf16>, vector<128x8xbf16>, vector<4x8xf32> -> vector<4x8xf32>
    %c0_15 = arith.constant 0 : index
    %c0_16 = arith.constant 0 : index
    %20 = vector.load %arg7[%c0_15, %c0_16] : memref<1x8xf32, #tpu.memory_space<vmem>>, vector<1x8xf32>
    %21 = vector.broadcast %20 : vector<1x8xf32> to vector<4x8xf32>
    %22 = arith.addf %19, %21 : vector<4x8xf32>
    %cst_17 = arith.constant dense<0xFF800000> : vector<4xf32>
    %23 = vector.multi_reduction <maximumf>, %22, %cst_17 [1] : vector<4x8xf32> to vector<4xf32>
    %24 = vector.shape_cast %23 : vector<4xf32> to vector<4x1xf32>
    %25 = vector.broadcast %24 : vector<4x1xf32> to vector<4x8xf32>
    %26 = arith.subf %22, %25 : vector<4x8xf32>
    %27 = math.exp %26 : vector<4x8xf32>
    %cst_18 = arith.constant dense<0.000000e+00> : vector<4xf32>
    %28 = vector.multi_reduction <add>, %27, %cst_18 [1] : vector<4x8xf32> to vector<4xf32>
    %29 = vector.shape_cast %28 : vector<4xf32> to vector<4x1xf32>
    %30 = tpu.reciprocal %29 {approx = true} : vector<4x1xf32> -> vector<4x1xf32>
    %31 = arith.mulf %29, %30 : vector<4x1xf32>
    %cst_19 = arith.constant 2.000000e+00 : f32
    %32 = vector.broadcast %cst_19 : f32 to vector<4x1xf32>
    %33 = arith.subf %32, %31 : vector<4x1xf32>
    %34 = arith.mulf %30, %33 : vector<4x1xf32>
    %35 = vector.broadcast %34 : vector<4x1xf32> to vector<4x8xf32>
    %36 = arith.mulf %27, %35 : vector<4x8xf32>
    %c0_20 = arith.constant 0 : index
    %c0_21 = arith.constant 0 : index
    %37 = vector.load %arg8[%c0_20, %c0_21] : memref<4x8xf32, #tpu.memory_space<vmem>>, vector<4x8xf32>
    tpu.vector_store %arg8[%c0_20, %c0_21], %36 {strides = array<i32>} : memref<4x8xf32, #tpu.memory_space<vmem>>, vector<4x8xf32>,
    return
  }
  func.func @transform_0(%arg0: i32) -> (i32, i32) {
    %c0_i32 = arith.constant 0 : i32
    %c0_i32_0 = arith.constant 0 : i32
    return %arg0, %c0_i32 : i32, i32
  }
  func.func @transform_1(%arg0: i32) -> (i32, i32) {
    %c0_i32 = arith.constant 0 : i32
    %c0_i32_0 = arith.constant 0 : i32
    %c0_i32_1 = arith.constant 0 : i32
    return %c0_i32, %c0_i32_0 : i32, i32
  }
  func.func @transform_2(%arg0: i32) -> (i32, i32) {
    %c0_i32 = arith.constant 0 : i32
    %c0_i32_0 = arith.constant 0 : i32
    %c0_i32_1 = arith.constant 0 : i32
    return %c0_i32, %c0_i32_0 : i32, i32
  }
  func.func @transform_3(%arg0: i32) -> (i32, i32) {
    %c0_i32 = arith.constant 0 : i32
    %c0_i32_0 = arith.constant 0 : i32
    %c0_i32_1 = arith.constant 0 : i32
    return %c0_i32, %c0_i32_0 : i32, i32
  }
  func.func @transform_4(%arg0: i32) -> (i32, i32) {
    %c0_i32 = arith.constant 0 : i32
    %c0_i32_0 = arith.constant 0 : i32
    %c0_i32_1 = arith.constant 0 : i32
    return %c0_i32, %c0_i32_0 : i32, i32
  }
  func.func @transform_5(%arg0: i32) -> (i32, i32) {
    %c0_i32 = arith.constant 0 : i32
    %c0_i32_0 = arith.constant 0 : i32
    %c0_i32_1 = arith.constant 0 : i32
    return %c0_i32, %c0_i32_0 : i32, i32
  }
  func.func @transform_6(%arg0: i32) -> (i32, i32) {
    %c0_i32 = arith.constant 0 : i32
    %c0_i32_0 = arith.constant 0 : i32
    %c0_i32_1 = arith.constant 0 : i32
    return %c0_i32, %c0_i32_0 : i32, i32
  }
  func.func @transform_7(%arg0: i32) -> (i32, i32) {
    %c0_i32 = arith.constant 0 : i32
    %c0_i32_0 = arith.constant 0 : i32
    return %arg0, %c0_i32 : i32, i32
  }
}

</mosaic_0001>

<llo_original>
// kernel: _lambda_.1
$region0: #{_lambda_.1}
  #allocation0 [shape = 'u32[]', space=smem, size = 0x4, offset = 0x4, fixed_abs, tag = 'smem constant byte address 0x4 - core index']
  #allocation1 [shape = 'u32[144,128]{1,0:T(1,128)}', space=vmem, size = 0x12000, scoped, tag = 'internal scratch']
  %s0 = inlined_call_operand.hbm [shape: f32[4,16], index: 0, kind: input, shape index: {}]
  %s1 = inlined_call_operand.hbm [shape: bf16[16,128], index: 1, kind: input, shape index: {}]
  %s2 = inlined_call_operand.vmem [shape: f32[1,128], index: 2, kind: input, shape index: {}]
  %s3 = inlined_call_operand.hbm [shape: bf16[128,128], index: 3, kind: input, shape index: {}]
  %s4 = inlined_call_operand.vmem [shape: f32[1,128], index: 4, kind: input, shape index: {}]
  %s5 = inlined_call_operand.hbm [shape: bf16[128,8], index: 5, kind: input, shape index: {}]
  %s6 = inlined_call_operand.vmem [shape: f32[1,8], index: 6, kind: input, shape index: {}]
  %s7 = inlined_call_operand.hbm [shape: f32[4,8], index: 7, kind: output, shape index: {}]
  %s8 = sld [smem:[#allocation0]]
  $region54: #{_lambda_.1} parent=0
    _
  %s10 = ssub.s32 1, %s8
  %s11 = scalar_select 0, %s10, %s8
  $region1: #{_lambda_.1} parent=0
    #allocation2 [shape = 'u8[2048]{0}', space=vmem, size = 0x800, scoped, tag = 'input window, operand 0, single buffered']
    #allocation3 [shape = 's32[1]{0}', space=sflag, size = 0x4, scoped, tag = 'scoped memory for _lambda_.1']
    #allocation4 [shape = 's32[1]{0}', space=sflag, size = 0x4, scoped, tag = 'scoped memory for _lambda_.1']
    #allocation5 [shape = 'u8[4096]{0}', space=vmem, size = 0x1000, scoped, tag = 'input window, operand 1, single buffered']
    #allocation6 [shape = 's32[1]{0}', space=sflag, size = 0x4, scoped, tag = 'scoped memory for _lambda_.1']
    #allocation7 [shape = 'u8[32768]{0}', space=vmem, size = 0x8000, scoped, tag = 'input window, operand 3, single buffered']
    #allocation8 [shape = 'u8[32768]{0}', space=vmem, size = 0x8000, scoped, tag = 'input window, operand 5, single buffered']
    #allocation9 [shape = 's32[1]{0}', space=sflag, size = 0x4, scoped, tag = 'scoped memory for _lambda_.1']
    #allocation10 [shape = 'u8[2048]{0}', space=vmem, size = 0x800, scoped, tag = 'output window, operand 0, single buffered']
    %12 = vsyncpa [#allocation3], 0
    %13 = vsyncpa [#allocation6], 0
    %14 = vsyncpa [#allocation9], 0
    %15 = vsyncpa [#allocation4], 0
    // Predicated region
    $region2: #{_lambda_.1} parent=1 // pred_check
      _
    $region3: #{_lambda_.1} parent=1 // pred_check_branch
      %17 = sbr.rel (0) target = $region5
    $region4: #{_lambda_.1} parent=1 // pred_region
      %s19 = ssub.s32 64, 64
      %20 = vsyncadd [#allocation3], %s19
      %s22 = sshll.u32 [#allocation2], 4
      %s23 = int_to_ptr.vmem [resolvable:$true] %s22
      %25 = dma.hbm_to_vmem [thread:$0]  %s0, 64, %s23, [#allocation3]
    $region5: #{_lambda_.1} parent=1 // pred_fallthru
      _
    // Predicated region
    $region6: #{_lambda_.1} parent=1 // pred_check
      _
    $region7: #{_lambda_.1} parent=1 // pred_check_branch
      %27 = sbr.rel (0) target = $region9
    $region8: #{_lambda_.1} parent=1 // pred_region
      %s29 = ssub.s32 128, 128
      %30 = vsyncadd [#allocation6], %s29
      %s31 = sshll.u32 [#allocation5], 4
      %s32 = int_to_ptr.vmem [resolvable:$true] %s31
      %37 = dma.hbm_to_vmem [thread:$0]  %s1, 128, %s32, [#allocation6], 64, 64, 4
    $region9: #{_lambda_.1} parent=1 // pred_fallthru
      _
    // Predicated region
    $region10: #{_lambda_.1} parent=1 // pred_check
      _
    $region11: #{_lambda_.1} parent=1 // pred_check_branch
      %39 = sbr.rel (0) target = $region13
    $region12: #{_lambda_.1} parent=1 // pred_region
      _
    $region13: #{_lambda_.1} parent=1 // pred_fallthru
      _
    // Predicated region
    $region14: #{_lambda_.1} parent=1 // pred_check
      _
    $region15: #{_lambda_.1} parent=1 // pred_check_branch
      %41 = sbr.rel (0) target = $region17
    $region16: #{_lambda_.1} parent=1 // pred_region
      %s43 = ssub.s32 1024, 1024
      %44 = vsyncadd [#allocation6], %s43
      %s45 = sshll.u32 [#allocation7], 4
      %s46 = int_to_ptr.vmem [resolvable:$true] %s45
      %51 = dma.hbm_to_vmem [thread:$0]  %s3, 1024, %s46, [#allocation6], 64, 64, 4
    $region17: #{_lambda_.1} parent=1 // pred_fallthru
      _
    // Predicated region
    $region18: #{_lambda_.1} parent=1 // pred_check
      _
    $region19: #{_lambda_.1} parent=1 // pred_check_branch
      %53 = sbr.rel (0) target = $region21
    $region20: #{_lambda_.1} parent=1 // pred_region
      _
    $region21: #{_lambda_.1} parent=1 // pred_fallthru
      _
    // Predicated region
    $region22: #{_lambda_.1} parent=1 // pred_check
      _
    $region23: #{_lambda_.1} parent=1 // pred_check_branch
      %55 = sbr.rel (0) target = $region25
    $region24: #{_lambda_.1} parent=1 // pred_region
      %s57 = ssub.s32 1024, 1024
      %58 = vsyncadd [#allocation9], %s57
      %s59 = sshll.u32 [#allocation8], 4
      %s60 = int_to_ptr.vmem [resolvable:$true] %s59
      %65 = dma.hbm_to_vmem [thread:$0]  %s5, 1024, %s60, [#allocation9], 64, 64, 4
    $region25: #{_lambda_.1} parent=1 // pred_fallthru
      _
    // Predicated region
    $region26: #{_lambda_.1} parent=1 // pred_check
      _
    $region27: #{_lambda_.1} parent=1 // pred_check_branch
      %67 = sbr.rel (0) target = $region29
    $region28: #{_lambda_.1} parent=1 // pred_region
      _
    $region29: #{_lambda_.1} parent=1 // pred_fallthru
      _
    // Predicated region
    $region30: #{_lambda_.1} parent=1 // pred_check
      _
    $region31: #{_lambda_.1} parent=1 // pred_check_branch
      %69 = sbr.rel (0) target = $region33
    $region32: #{_lambda_.1} parent=1 // pred_region
      %70 = dma.done [#allocation3], 64
    $region33: #{_lambda_.1} parent=1 // pred_fallthru
      _
    // Predicated region
    $region34: #{_lambda_.1} parent=1 // pred_check
      _
    $region35: #{_lambda_.1} parent=1 // pred_check_branch
      %72 = sbr.rel (0) target = $region37
    $region36: #{_lambda_.1} parent=1 // pred_region
      %73 = dma.done [#allocation6], 128
    $region37: #{_lambda_.1} parent=1 // pred_fallthru
      _
    // Predicated region
    $region38: #{_lambda_.1} parent=1 // pred_check
      _
    $region39: #{_lambda_.1} parent=1 // pred_check_branch
      %75 = sbr.rel (0) target = $region41
    $region40: #{_lambda_.1} parent=1 // pred_region
      %76 = dma.done [#allocation6], 1024
    $region41: #{_lambda_.1} parent=1 // pred_fallthru
      _
    // Predicated region
    $region42: #{_lambda_.1} parent=1 // pred_check
      _
    $region43: #{_lambda_.1} parent=1 // pred_check_branch
      %78 = sbr.rel (0) target = $region45
    $region44: #{_lambda_.1} parent=1 // pred_region
      %79 = dma.done [#allocation9], 1024
    $region45: #{_lambda_.1} parent=1 // pred_fallthru
      _
    %v81 = vld [vmem:[#allocation2] sm:$0xf]
    %v82 = vpack.c.bf16 %v81, %v81
    %v83 = vld [vmem:[#allocation5] sm:$0xf]
    %v84 = vld [vmem:[#allocation5 + $0x4] sm:$0xf]
    %v85 = vld [vmem:[%s2] sm:$0x1]
    %v87 = vlaneseq
    %v88 = vshrl.u32 %v87, 7
    %v89 = vsub.s32 0, %v88
    %v90 = vrot.slane %v85, %v89
    %v94 = vunpack.c.l.b16 %v83
    %v95 = vunpack.c.l.b16 %v84
    %v96 = vpack.c.b16 %v95, %v94
    %vm98 = vcmask 130048
    %v100 = vsel %vm98, %v82, 0
    %102 = vmatprep.subr.bf16.mxu0 0
    %103 = vmatpush1.bf16.msra.mxu0 0
    %104 = vmatprep.subr.bf16.mxu0 0
    %105 = vmatpush1.bf16.msra.mxu0 0
    %106 = vmatprep.subr.bf16.mxu0 0
    %107 = vmatpush1.bf16.msra.mxu0 0
    %108 = vmatprep.subr.bf16.mxu0 0
    %109 = vmatpush1.bf16.msra.mxu0 0
    %110 = vmatprep.subr.bf16.mxu0 0
    %111 = vmatpush1.bf16.msra.mxu0 0
    %112 = vmatprep.subr.bf16.mxu0 0
    %113 = vmatpush1.bf16.msra.mxu0 0
    %114 = vmatprep.subr.bf16.mxu0 0
    %115 = vmatpush1.bf16.msra.mxu0 0
    %116 = vmatprep.subr.bf16.mxu0 0
    %117 = vmatpush1.bf16.msra.mxu0 %v96
    %118 = vmatprep.subr.bf16.mxu0 0
    %119 = vmatpush2.bf16.msra.mxu0 0
    %120 = vmatprep.subr.bf16.mxu0 0
    %121 = vmatpush2.bf16.msra.mxu0 0
    %122 = vmatprep.subr.bf16.mxu0 0
    %123 = vmatpush2.bf16.msra.mxu0 0
    %124 = vmatprep.subr.bf16.mxu0 0
    %125 = vmatpush2.bf16.msra.mxu0 0
    %126 = vmatprep.subr.bf16.mxu0 0
    %127 = vmatpush2.bf16.msra.mxu0 0
    %128 = vmatprep.subr.bf16.mxu0 0
    %129 = vmatpush2.bf16.msra.mxu0 0
    %130 = vmatprep.subr.bf16.mxu0 0
    %131 = vmatpush2.bf16.msra.mxu0 0
    %132 = vmatprep.subr.bf16.mxu0 0
    %133 = vmatpush2.bf16.msra.mxu0 0
    %134 = vmatprep.mubr.bf16.mxu0 0
    %135 = vmatmul.mubr.bf16.gmra.mxu0 %v100
    %v136 = vpop.f32.mrf.mxu0
    %v137 = vadd.f32 %v90, %v136
    %v138 = vpop.f32.mrf.mxu0
    %v139 = vpop.f32.mrf.mxu0
    %v140 = vpop.f32.mrf.mxu0
    %141 = vdwg.mxu0
    %v142 = vmax.f32 %v137, 0.0
    %v143 = vpack.c.bf16 %v142, %v142
    %v144 = vld [vmem:[#allocation7] sm:$0xf]
    %v145 = vld [vmem:[#allocation7 + $0x4] sm:$0xf]
    %v146 = vld [vmem:[#allocation7 + $0x8] sm:$0xf]
    %v147 = vld [vmem:[#allocation7 + $0xc] sm:$0xf]
    %v148 = vld [vmem:[#allocation7 + $0x10] sm:$0xf]
    %v149 = vld [vmem:[#allocation7 + $0x14] sm:$0xf]
    %v150 = vld [vmem:[#allocation7 + $0x18] sm:$0xf]
    %v151 = vld [vmem:[#allocation7 + $0x1c] sm:$0xf]
    %v152 = vld [vmem:[#allocation7 + $0x20] sm:$0xf]
    %v153 = vld [vmem:[#allocation7 + $0x24] sm:$0xf]
    %v154 = vld [vmem:[#allocation7 + $0x28] sm:$0xf]
    %v155 = vld [vmem:[#allocation7 + $0x2c] sm:$0xf]
    %v156 = vld [vmem:[#allocation7 + $0x30] sm:$0xf]
    %v157 = vld [vmem:[#allocation7 + $0x34] sm:$0xf]
    %v158 = vld [vmem:[#allocation7 + $0x38] sm:$0xf]
    %v159 = vld [vmem:[#allocation7 + $0x3c] sm:$0xf]
    %v160 = vld [vmem:[%s4] sm:$0x1]
    %v162 = vlaneseq
    %v163 = vshrl.u32 %v162, 7
    %v164 = vsub.s32 0, %v163
    %v165 = vrot.slane %v160, %v164
    %v183 = vunpack.c.l.b16 %v144
    %v184 = vunpack.c.l.b16 %v145
    %v185 = vunpack.c.l.b16 %v146
    %v186 = vunpack.c.l.b16 %v147
    %v187 = vunpack.c.l.b16 %v148
    %v188 = vunpack.c.l.b16 %v149
    %v189 = vunpack.c.l.b16 %v150
    %v190 = vunpack.c.l.b16 %v151
    %v191 = vunpack.c.l.b16 %v152
    %v192 = vunpack.c.l.b16 %v153
    %v193 = vunpack.c.l.b16 %v154
    %v194 = vunpack.c.l.b16 %v155
    %v195 = vunpack.c.l.b16 %v156
    %v196 = vunpack.c.l.b16 %v157
    %v197 = vunpack.c.l.b16 %v158
    %v198 = vunpack.c.l.b16 %v159
    %v199 = vpack.c.b16 %v184, %v183
    %v200 = vpack.c.b16 %v186, %v185
    %v201 = vpack.c.b16 %v188, %v187
    %v202 = vpack.c.b16 %v190, %v189
    %v203 = vpack.c.b16 %v192, %v191
    %v204 = vpack.c.b16 %v194, %v193
    %v205 = vpack.c.b16 %v196, %v195
    %v206 = vpack.c.b16 %v198, %v197
    %215 = vmatprep.subr.bf16.mxu0 0
    %216 = vmatpush1.bf16.msra.mxu0 %v206
    %217 = vmatprep.subr.bf16.mxu0 0
    %218 = vmatpush1.bf16.msra.mxu0 %v205
    %219 = vmatprep.subr.bf16.mxu0 0
    %220 = vmatpush1.bf16.msra.mxu0 %v204
    %221 = vmatprep.subr.bf16.mxu0 0
    %222 = vmatpush1.bf16.msra.mxu0 %v203
    %223 = vmatprep.subr.bf16.mxu0 0
    %224 = vmatpush1.bf16.msra.mxu0 %v202
    %225 = vmatprep.subr.bf16.mxu0 0
    %226 = vmatpush1.bf16.msra.mxu0 %v201
    %227 = vmatprep.subr.bf16.mxu0 0
    %228 = vmatpush1.bf16.msra.mxu0 %v200
    %229 = vmatprep.subr.bf16.mxu0 0
    %230 = vmatpush1.bf16.msra.mxu0 %v199
    %231 = vmatprep.subr.bf16.mxu0 0
    %232 = vmatpush2.bf16.msra.mxu0 0
    %233 = vmatprep.subr.bf16.mxu0 0
    %234 = vmatpush2.bf16.msra.mxu0 0
    %235 = vmatprep.subr.bf16.mxu0 0
    %236 = vmatpush2.bf16.msra.mxu0 0
    %237 = vmatprep.subr.bf16.mxu0 0
    %238 = vmatpush2.bf16.msra.mxu0 0
    %239 = vmatprep.subr.bf16.mxu0 0
    %240 = vmatpush2.bf16.msra.mxu0 0
    %241 = vmatprep.subr.bf16.mxu0 0
    %242 = vmatpush2.bf16.msra.mxu0 0
    %243 = vmatprep.subr.bf16.mxu0 0
    %244 = vmatpush2.bf16.msra.mxu0 0
    %245 = vmatprep.subr.bf16.mxu0 0
    %246 = vmatpush2.bf16.msra.mxu0 0
    %247 = vmatprep.mubr.bf16.mxu0 0
    %248 = vmatmul.mubr.bf16.gmra.mxu0 %v143
    %v249 = vpop.f32.mrf.mxu0
    %v250 = vadd.f32 %v165, %v249
    %v251 = vpop.f32.mrf.mxu0
    %v252 = vpop.f32.mrf.mxu0
    %v253 = vpop.f32.mrf.mxu0
    %254 = vdwg.mxu0
    %v255 = vmax.f32 %v250, 0.0
    %v256 = vpack.c.bf16 %v255, %v255
    %v257 = vld [vmem:[#allocation8] sm:$0xf]
    %v258 = vld [vmem:[#allocation8 + $0x4] sm:$0xf]
    %v259 = vld [vmem:[#allocation8 + $0x8] sm:$0xf]
    %v260 = vld [vmem:[#allocation8 + $0xc] sm:$0xf]
    %v261 = vld [vmem:[#allocation8 + $0x10] sm:$0xf]
    %v262 = vld [vmem:[#allocation8 + $0x14] sm:$0xf]
    %v263 = vld [vmem:[#allocation8 + $0x18] sm:$0xf]
    %v264 = vld [vmem:[#allocation8 + $0x1c] sm:$0xf]
    %v265 = vld [vmem:[#allocation8 + $0x20] sm:$0xf]
    %v266 = vld [vmem:[#allocation8 + $0x24] sm:$0xf]
    %v267 = vld [vmem:[#allocation8 + $0x28] sm:$0xf]
    %v268 = vld [vmem:[#allocation8 + $0x2c] sm:$0xf]
    %v269 = vld [vmem:[#allocation8 + $0x30] sm:$0xf]
    %v270 = vld [vmem:[#allocation8 + $0x34] sm:$0xf]
    %v271 = vld [vmem:[#allocation8 + $0x38] sm:$0xf]
    %v272 = vld [vmem:[#allocation8 + $0x3c] sm:$0xf]
    %v273 = vld [vmem:[%s6] sm:$0x1]
    %v275 = vlaneseq
    %v276 = vshrl.u32 %v275, 7
    %v277 = vsub.s32 0, %v276
    %v278 = vrot.slane %v273, %v277
    %v296 = vunpack.c.l.b16 %v257
    %v297 = vunpack.c.l.b16 %v258
    %v298 = vunpack.c.l.b16 %v259
    %v299 = vunpack.c.l.b16 %v260
    %v300 = vunpack.c.l.b16 %v261
    %v301 = vunpack.c.l.b16 %v262
    %v302 = vunpack.c.l.b16 %v263
    %v303 = vunpack.c.l.b16 %v264
    %v304 = vunpack.c.l.b16 %v265
    %v305 = vunpack.c.l.b16 %v266
    %v306 = vunpack.c.l.b16 %v267
    %v307 = vunpack.c.l.b16 %v268
    %v308 = vunpack.c.l.b16 %v269
    %v309 = vunpack.c.l.b16 %v270
    %v310 = vunpack.c.l.b16 %v271
    %v311 = vunpack.c.l.b16 %v272
    %v312 = vpack.c.b16 %v297, %v296
    %v313 = vpack.c.b16 %v299, %v298
    %v314 = vpack.c.b16 %v301, %v300
    %v315 = vpack.c.b16 %v303, %v302
    %v316 = vpack.c.b16 %v305, %v304
    %v317 = vpack.c.b16 %v307, %v306
    %v318 = vpack.c.b16 %v309, %v308
    %v319 = vpack.c.b16 %v311, %v310
    %328 = vmatprep.subr.bf16.mxu0 0
    %329 = vmatpush1.bf16.msra.mxu0 %v319
    %330 = vmatprep.subr.bf16.mxu0 0
    %331 = vmatpush1.bf16.msra.mxu0 %v318
    %332 = vmatprep.subr.bf16.mxu0 0
    %333 = vmatpush1.bf16.msra.mxu0 %v317
    %334 = vmatprep.subr.bf16.mxu0 0
    %335 = vmatpush1.bf16.msra.mxu0 %v316
    %336 = vmatprep.subr.bf16.mxu0 0
    %337 = vmatpush1.bf16.msra.mxu0 %v315
    %338 = vmatprep.subr.bf16.mxu0 0
    %339 = vmatpush1.bf16.msra.mxu0 %v314
    %340 = vmatprep.subr.bf16.mxu0 0
    %341 = vmatpush1.bf16.msra.mxu0 %v313
    %342 = vmatprep.subr.bf16.mxu0 0
    %343 = vmatpush1.bf16.msra.mxu0 %v312
    %344 = vmatprep.subr.bf16.mxu0 0
    %345 = vmatpush2.bf16.msra.mxu0 0
    %346 = vmatprep.subr.bf16.mxu0 0
    %347 = vmatpush2.bf16.msra.mxu0 0
    %348 = vmatprep.subr.bf16.mxu0 0
    %349 = vmatpush2.bf16.msra.mxu0 0
    %350 = vmatprep.subr.bf16.mxu0 0
    %351 = vmatpush2.bf16.msra.mxu0 0
    %352 = vmatprep.subr.bf16.mxu0 0
    %353 = vmatpush2.bf16.msra.mxu0 0
    %354 = vmatprep.subr.bf16.mxu0 0
    %355 = vmatpush2.bf16.msra.mxu0 0
    %356 = vmatprep.subr.bf16.mxu0 0
    %357 = vmatpush2.bf16.msra.mxu0 0
    %358 = vmatprep.subr.bf16.mxu0 0
    %359 = vmatpush2.bf16.msra.mxu0 0
    %360 = vmatprep.mubr.bf16.mxu0 0
    %361 = vmatmul.mubr.bf16.gmra.mxu0 %v256
    %v362 = vpop.f32.mrf.mxu0
    %v363 = vadd.f32 %v278, %v362
    %v364 = vpop.f32.mrf.mxu0
    %v365 = vpop.f32.mrf.mxu0
    %v366 = vpop.f32.mrf.mxu0
    %367 = vdwg.mxu0
    %vm368 = vcmask 60416
    %v369 = vsel %vm368, %v363, -inf
    %370 = vmax.xlane.f32.xlu0 %v369
    %v371 = vpop.xlane.xlu0 %370
    %v372 = vsub.f32 %v363, %v371
    %v373 = vmul.f32 %v372, 1.442695
    %v374 = vpow.pop %v373
    %v375 = vsel %vm368, %v374, 0.0
    %376 = vadd.xlane.f32.xlu0 %v375
    %v377 = vpop.xlane.xlu0 %376
    %v378 = vrcp.pop %v377
    %v379 = vmul.f32 %v377, %v378
    %v380 = vsub.f32 2.0, %v379
    %v381 = vmul.f32 %v378, %v380
    %v382 = vmul.f32 %v374, %v381
    %383 = vst.msk [vmem:[#allocation10] sm:$0xf] %vm368, %v382
    // Predicated region
    $region46: #{_lambda_.1} parent=1 // pred_check
      _
    $region47: #{_lambda_.1} parent=1 // pred_check_branch
      %385 = sbr.rel (0) target = $region49
    $region48: #{_lambda_.1} parent=1 // pred_region
      %s387 = ssub.s32 64, 64
      %388 = vsyncadd [#allocation4], %s387
      %s390 = sshll.u32 [#allocation10], 4
      %s391 = int_to_ptr.vmem [resolvable:$true] %s390
      %393 = dma.vmem_to_hbm [thread:$0]  %s391, 64, %s7, [#allocation4]
    $region49: #{_lambda_.1} parent=1 // pred_fallthru
      _
    // Predicated region
    $region50: #{_lambda_.1} parent=1 // pred_check
      _
    $region51: #{_lambda_.1} parent=1 // pred_check_branch
      %395 = sbr.rel (0) target = $region53
    $region52: #{_lambda_.1} parent=1 // pred_region
      %396 = dma.done [#allocation4], 64
    $region53: #{_lambda_.1} parent=1 // pred_fallthru
      _
    %397 = vsyncpa [#allocation3], 1
    %398 = vsyncpa [#allocation6], 1
    %399 = vsyncpa [#allocation9], 1
    %400 = vsyncpa [#allocation4], 1

</llo_original>
